<compile_context>
chip_gen: v6e
topology: v6e:2x2x1
jax: 0.10.0
libtpu: 0.0.40
codegen_flags: <defaults>
</compile_context>

<pallas_src>
import functools

import jax
import jax.numpy as jnp
from jax.experimental import pallas as pl
from jax.experimental.pallas import tpu as pltpu


def _one_hot_kernel(x_ref, o_ref):
    """x_ref: (TN, 1) int32.  o_ref: (TN, TV) float32.

    out[r, c] = 1.0 iff x[r, 0] == (vocab_tile_base + c).
    The tile offset is subtracted from the (TN, 1) index column (TN/8 vregs)
    instead of added to the (TN, TV) iota (TN*TV/1024 vregs), keeping VALU
    usage negligible even with 4096-lane tiles.  The kernel is HBM-write-bound.
    """
    j = pl.program_id(1)                      # vocab-tile index
    tv = o_ref.shape[1]
    local_ids = jax.lax.broadcasted_iota(jnp.int32, o_ref.shape, dimension=1)
    shifted = x_ref[...] - j * tv             # (TN, 1), broadcast against iota
    o_ref[...] = (shifted == local_ids).astype(jnp.float32)


# Aim for ~8 MiB f32 output blocks: big enough that the ~0.35 us per-grid-step
# overhead is amortized on v6e/v7x HBM bandwidth, small enough that the
# double-buffered output (2 x 8 MiB) fits comfortably under a 32 MiB scoped
# VMEM limit on every generation (v7x physical VMEM is 64 MiB).
_TARGET_BLOCK_BYTES = 8 << 20
_MAX_TV = 4096
_MAX_TN = 4096
_VMEM_LIMIT_BYTES = 32 << 20


def _pick_tiles(n: int, vocab_size: int) -> tuple[int, int]:
    # Vocab tile: full extent if small (always a legal block), else 4096 lanes
    # with one masked partial edge tile (pl.cdiv grid) -- keeps >95% of stores
    # lane-dense and unmasked for common vocabs like 32000.
    tv = vocab_size if vocab_size <= _MAX_TV else _MAX_TV
    # Row tile: fill the byte budget; multiple of 8 sublanes unless it is the
    # full extent (which is always legal).
    tn_cap = max(8, _TARGET_BLOCK_BYTES // (tv * 4))
    tn_cap = min(tn_cap, _MAX_TN)
    if n <= tn_cap:
        tn = n
    else:
        tn = (tn_cap // 8) * 8
    return tn, tv


@functools.partial(jax.jit, static_argnames=("vocab_size", "tile_rows", "tile_cols"))
def one_hot_embed(x: jax.Array, vocab_size: int,
                  tile_rows: int | None = None,
                  tile_cols: int | None = None) -> jax.Array:
    """F.one_hot(x, num_classes=vocab_size).float() for any-rank index tensor."""
    orig_shape = x.shape
    n = 1
    for d in orig_shape:
        n *= d
    idx2d = x.reshape(n, 1).astype(jnp.int32)

    tn, tv = _pick_tiles(n, vocab_size)
    if tile_rows is not None:
        tn = tile_rows
    if tile_cols is not None:
        tv = tile_cols

    grid = (pl.cdiv(n, tn), pl.cdiv(vocab_size, tv))

    out = pl.pallas_call(
        _one_hot_kernel,
        out_shape=jax.ShapeDtypeStruct((n, vocab_size), jnp.float32),
        grid=grid,
        in_specs=[
            # index_map ignores the vocab axis -> the tiny index tile stays
            # resident in VMEM across every vocab tile of the same row block.
            pl.BlockSpec((tn, 1), lambda i, j: (i, 0)),
        ],
        out_specs=pl.BlockSpec((tn, tv), lambda i, j: (i, j)),
        compiler_params=pltpu.CompilerParams(
            # No cross-step dependence anywhere: let the compiler shard either
            # axis across v7x's two TensorCores (harmless on v5e/v6e).
            dimension_semantics=("parallel", "parallel"),
            vmem_limit_bytes=_VMEM_LIMIT_BYTES,
        ),
        cost_estimate=pl.CostEstimate(
            flops=n * vocab_size,
            transcendentals=0,
            bytes_accessed=n * vocab_size * 4 + n * 4,
        ),
    )(idx2d)

    return out.reshape(*orig_shape, vocab_size)


if __name__ == "__main__":
    key = jax.random.PRNGKey(0)

    # Main demo: B=2, S=16, vocab=128 (lane-dense, single full-extent block).
    VOCAB_SIZE = 128
    B, S = 2, 16
    x = jax.random.randint(key, (B, S), minval=0, maxval=VOCAB_SIZE, dtype=jnp.int32)
    out = jax.block_until_ready(one_hot_embed(x, VOCAB_SIZE))
    ref = jax.nn.one_hot(x, VOCAB_SIZE, dtype=jnp.float32)
    assert out.shape == (B, S, VOCAB_SIZE)
    assert out.dtype == jnp.float32
    assert jnp.array_equal(out, ref), "Pallas one-hot mismatch vs reference (aligned case)"

    # Unaligned shapes: rows and vocab not multiples of (8, 128) -> exercises
    # full-extent boundary blocks.
    x2 = jax.random.randint(jax.random.PRNGKey(1), (3, 5), minval=0, maxval=200,
                            dtype=jnp.int32)
    out2 = jax.block_until_ready(one_hot_embed(x2, 200))
    ref2 = jax.nn.one_hot(x2, 200, dtype=jnp.float32)
    assert jnp.array_equal(out2, ref2), "Pallas one-hot mismatch vs reference (unaligned case)"

    # Force tiny tiles to exercise the pl.cdiv masked partial-block writeback
    # path (the same path large N / large vocab would take).
    x3 = jax.random.randint(jax.random.PRNGKey(2), (20,), minval=0, maxval=300,
                            dtype=jnp.int32)
    out3 = jax.block_until_ready(one_hot_embed(x3, 300, tile_rows=8, tile_cols=128))
    ref3 = jax.nn.one_hot(x3, 300, dtype=jnp.float32)
    assert jnp.array_equal(out3, ref3), "Pallas one-hot mismatch vs reference (partial tiles)"

    print("KERNEL_OK")
</pallas_src>

<mosaic_0001>
module attributes {stable_mosaic.version = 11 : i64} {
  func.func @_one_hot_kernel(%arg0: i32, %arg1: i32, %arg2: memref<32x1xi32, #tpu.memory_space<vmem>>, %arg3: memref<32x128xf32, #tpu.memory_space<vmem>>) attributes {dimension_semantics = [#tpu.dimension_semantics<parallel>, #tpu.dimension_semantics<parallel>], iteration_bounds = array<i64: 1, 1>, scalar_prefetch = 0 : i64, scratch_operands = 0 : i64, tpu.core_type = #tpu.core_type<tc>, window_params = [{transform_indices = @transform_0, window_bounds = array<i64: 32, 1>}, {transform_indices = @transform_1, window_bounds = array<i64: 32, 128>}]} {
    %0 = tpu.iota {dimensions = array<i32: 1>} : vector<32x128xi32>
    %c0 = arith.constant 0 : index
    %c0_0 = arith.constant 0 : index
    %1 = vector.load %arg2[%c0, %c0_0] : memref<32x1xi32, #tpu.memory_space<vmem>>, vector<32x1xi32>
    %c128_i32 = arith.constant 128 : i32
    %2 = arith.muli %arg1, %c128_i32 : i32
    %3 = vector.broadcast %2 : i32 to vector<32x1xi32>
    %4 = arith.subi %1, %3 : vector<32x1xi32>
    %5 = vector.broadcast %4 : vector<32x1xi32> to vector<32x128xi32>
    %6 = arith.cmpi eq, %5, %0 : vector<32x128xi32>
    %7 = arith.extui %6 : vector<32x128xi1> to vector<32x128xi32>
    %8 = arith.sitofp %7 : vector<32x128xi32> to vector<32x128xf32>
    %c0_1 = arith.constant 0 : index
    %c0_2 = arith.constant 0 : index
    %9 = vector.load %arg3[%c0_1, %c0_2] : memref<32x128xf32, #tpu.memory_space<vmem>>, vector<32x128xf32>
    tpu.vector_store %arg3[%c0_1, %c0_2], %8 {strides = array<i32>} : memref<32x128xf32, #tpu.memory_space<vmem>>, vector<32x128xf32>,
    return
  }
  func.func @transform_0(%arg0: i32, %arg1: i32) -> (i32, i32) {
    %c0_i32 = arith.constant 0 : i32
    %c0_i32_0 = arith.constant 0 : i32
    return %arg0, %c0_i32 : i32, i32
  }
  func.func @transform_1(%arg0: i32, %arg1: i32) -> (i32, i32) {
    %c0_i32 = arith.constant 0 : i32
    return %arg0, %arg1 : i32, i32
  }
}

</mosaic_0001>

<llo_original>
// kernel: one_hot_embed.1
$region0: #{one_hot_embed.1}
  #allocation0 [shape = 'u32[]', space=smem, size = 0x4, offset = 0x4, fixed_abs, tag = 'smem constant byte address 0x4 - core index']
  #allocation1 [shape = 'u32[144,128]{1,0:T(1,128)}', space=vmem, size = 0x12000, scoped, tag = 'internal scratch']
  %s0 = inlined_call_operand.vmem [shape: s32[32,1], index: 0, kind: input, shape index: {}]
  %s1 = inlined_call_operand.hbm [shape: f32[32,128], index: 1, kind: output, shape index: {}]
  %s2 = sld [smem:[#allocation0]]
  $region14: #{one_hot_embed.1} parent=0
    _
  %s4 = ssub.s32 1, %s2
  %s5 = scalar_select 0, %s4, %s2
  $region1: #{one_hot_embed.1} parent=0
    #allocation2 [shape = 'u8[16384]{0}', space=vmem, size = 0x4000, scoped, tag = 'output window, operand 0, single buffered']
    #allocation3 [shape = 's32[1]{0}', space=sflag, size = 0x4, scoped, tag = 'scoped memory for one_hot_embed.1']
    %6 = vsyncpa [#allocation3], 0
    // Predicated region
    $region2: #{one_hot_embed.1} parent=1 // pred_check
      _
    $region3: #{one_hot_embed.1} parent=1 // pred_check_branch
      %8 = sbr.rel (0) target = $region5
    $region4: #{one_hot_embed.1} parent=1 // pred_region
      _
    $region5: #{one_hot_embed.1} parent=1 // pred_fallthru
      _
    %v9 = vlaneseq
    %v10 = vand.u32 %v9, 127
    %v11 = vld [vmem:[%s0] sm:$0xff]
    %v12 = vld [vmem:[%s0 + $0x8] sm:$0xff]
    %v13 = vld [vmem:[%s0 + $0x10] sm:$0xff]
    %v14 = vld [vmem:[%s0 + $0x18] sm:$0xff]
    %s15 = smul.u32 0, 128
    %v16 = vstv %s15
    %v17 = vsub.s32 %v11, %v16
    %v18 = vsub.s32 %v12, %v16
    %v19 = vsub.s32 %v13, %v16
    %v20 = vsub.s32 %v14, %v16
    %21 = vset.pattern.permute.xlu0 0
    %22 = vperm.xlu0 %21, %v17
    %v23 = vpop.permute.xlu0 %22
    %24 = vset.pattern.permute.xlu0 0
    %25 = vperm.xlu0 %24, %v18
    %v26 = vpop.permute.xlu0 %25
    %27 = vset.pattern.permute.xlu0 0
    %28 = vperm.xlu0 %27, %v19
    %v29 = vpop.permute.xlu0 %28
    %30 = vset.pattern.permute.xlu0 0
    %31 = vperm.xlu0 %30, %v20
    %v32 = vpop.permute.xlu0 %31
    %vm33 = vcmp.eq.s32.totalorder %v23, %v10
    %vm34 = vcmp.eq.s32.totalorder %v26, %v10
    %vm35 = vcmp.eq.s32.totalorder %v29, %v10
    %vm36 = vcmp.eq.s32.totalorder %v32, %v10
    %v37 = vsel %vm33, 1, 0
    %v38 = vsel %vm34, 1, 0
    %v39 = vsel %vm35, 1, 0
    %v40 = vsel %vm36, 1, 0
    %v41 = vcvt.s32.f32 %v37
    %v42 = vcvt.s32.f32 %v38
    %v43 = vcvt.s32.f32 %v39
    %v44 = vcvt.s32.f32 %v40
    %45 = vst [vmem:[#allocation2] sm:$0xff] %v41
    %46 = vst [vmem:[#allocation2 + $0x8] sm:$0xff] %v42
    %47 = vst [vmem:[#allocation2 + $0x10] sm:$0xff] %v43
    %48 = vst [vmem:[#allocation2 + $0x18] sm:$0xff] %v44
    // Predicated region
    $region6: #{one_hot_embed.1} parent=1 // pred_check
      _
    $region7: #{one_hot_embed.1} parent=1 // pred_check_branch
      %50 = sbr.rel (0) target = $region9
    $region8: #{one_hot_embed.1} parent=1 // pred_region
      %s52 = ssub.s32 512, 512
      %53 = vsyncadd [#allocation3], %s52
      %s54 = sshll.u32 [#allocation2], 4
      %s55 = int_to_ptr.vmem [resolvable:$true] %s54
      %60 = dma.vmem_to_hbm [thread:$0]  %s55, 512, %s1, [#allocation3], 128, 128, 8
    $region9: #{one_hot_embed.1} parent=1 // pred_fallthru
      _
    // Predicated region
    $region10: #{one_hot_embed.1} parent=1 // pred_check
      _
    $region11: #{one_hot_embed.1} parent=1 // pred_check_branch
      %62 = sbr.rel (0) target = $region13
    $region12: #{one_hot_embed.1} parent=1 // pred_region
      %63 = dma.done [#allocation3], 512
    $region13: #{one_hot_embed.1} parent=1 // pred_fallthru
      _
    %64 = vsyncpa [#allocation3], 1

</llo_original>
